<compile_context>
chip_gen: v7x
topology: tpu7x:2x2x1
jax: 0.10.0
libtpu: 0.0.40
codegen_flags: <defaults>
</compile_context>

<pallas_src>
import functools

import jax
import jax.numpy as jnp
from jax.experimental import pallas as pl
from jax.experimental.pallas import tpu as pltpu


def _kl_div_kernel(x1_ref, x2_ref, o_ref, *, inv_temp):
    # Whole (block_n, C) tile in VMEM; softmax reduction over the last (lane)
    # axis matches PyTorch dim=1 for (N, C) logits.  All math in f32.
    a = x1_ref[...].astype(jnp.float32) * inv_temp
    b = x2_ref[...].astype(jnp.float32) * inv_temp

    # Per-row statistics, shape (block_n, 1).
    a_max = jnp.max(a, axis=-1, keepdims=True)
    b_max = jnp.max(b, axis=-1, keepdims=True)
    log_sum_ea = jnp.log(jnp.sum(jnp.exp(a - a_max), axis=-1, keepdims=True))
    b_shift = b - b_max
    log_sum_eb = jnp.log(jnp.sum(jnp.exp(b_shift), axis=-1, keepdims=True))

    # log_softmax(b) - log_softmax(a)
    #   = (b - a) - [(b_max - a_max) + (log(sum_eb) - log(sum_ea))]
    kl = (b - a) - ((b_max - a_max) + (log_sum_eb - log_sum_ea))

    # softmax(b), with the per-row normalization folded into the exponent so
    # no extra full-tile temporary has to stay live.
    p2 = jnp.exp(b_shift - log_sum_eb)

    o_ref[...] = (p2 * kl).astype(o_ref.dtype)


def _round_up(x: int, m: int) -> int:
    return ((x + m - 1) // m) * m


def _vmem_capacity_bytes() -> int:
    try:
        return int(pltpu.get_tpu_info().vmem_capacity_bytes)
    except Exception:
        return 64 << 20  # conservative fallback (v7x per-TensorCore)


def _plan_tiling(n: int, c: int, io_itemsize: int):
    """Pick (block_n, vmem_limit_bytes) for an (n, c) problem."""
    sublane = max(8, 32 // io_itemsize)       # 8 for f32, 16 for bf16
    c_lane = _round_up(c, 128)                # internal VMEM lane padding
    vmem_capacity = _vmem_capacity_bytes()

    # (a) HBM I/O per grid step across the 3 streams: target ~8 MB so the
    #     ~0.35 us/step overhead is <1% of the DMA time on every generation.
    target_io_bytes = 8 << 20
    bn_io = max(sublane, target_io_bytes // (3 * c * io_itemsize))

    # (b) VMEM footprint per row of block_n:
    #       2 (double buffer) x 3 (I/O tiles) in the I/O dtype
    #     + ~5 live full-tile f32 temporaries inside the kernel body.
    bytes_per_row = 2 * 3 * c_lane * io_itemsize + 5 * c_lane * 4
    vmem_tile_budget = int(vmem_capacity * 0.45)
    bn_vmem = max(sublane, vmem_tile_budget // bytes_per_row)

    bn = min(bn_io, bn_vmem)
    bn = max(sublane, (bn // sublane) * sublane)

    # Ensure >= 2 grid steps when the batch allows it, so v7x's two
    # TensorCores both get work (harmless extra step on v5e/v6e).
    if n >= 2 * sublane:
        bn = min(bn, _round_up(pl.cdiv(n, 2), sublane))

    # Never exceed the batch; a full-extent row block is always legal.
    if bn >= n:
        bn = n

    # vmem_limit from the actual footprint (+margin), capped per-chip.
    bn_padded = _round_up(bn, sublane)
    footprint = bn_padded * bytes_per_row
    vmem_limit = min(int(vmem_capacity * 0.85),
                     max(32 << 20, footprint + (16 << 20)))
    return int(bn), int(vmem_limit)


def distillation_loss(out1, out2, temp: float, *, block_n: int | None = None):
    """Elementwise KL distillation loss, shape-preserving (reduction='none')."""
    assert out1.shape == out2.shape and out1.ndim == 2
    n, c = out1.shape
    out_dtype = out1.dtype
    io_itemsize = jnp.dtype(out_dtype).itemsize

    auto_bn, vmem_limit = _plan_tiling(n, c, io_itemsize)
    if block_n is None:
        block_n = auto_bn
    else:
        sublane = max(8, 32 // io_itemsize)
        block_n = min(n, max(sublane, (block_n // sublane) * sublane))

    grid = (pl.cdiv(n, block_n),)
    kernel = functools.partial(_kl_div_kernel, inv_temp=1.0 / float(temp))

    return pl.pallas_call(
        kernel,
        out_shape=jax.ShapeDtypeStruct((n, c), out_dtype),
        grid_spec=pltpu.PrefetchScalarGridSpec(
            num_scalar_prefetch=0,
            grid=grid,
            in_specs=[
                pl.BlockSpec((block_n, c), lambda i: (i, 0)),
                pl.BlockSpec((block_n, c), lambda i: (i, 0)),
            ],
            out_specs=pl.BlockSpec((block_n, c), lambda i: (i, 0)),
        ),
        compiler_params=pltpu.CompilerParams(
            dimension_semantics=("parallel",),
            vmem_limit_bytes=vmem_limit,
        ),
    )(out1, out2)


def _reference(out1, out2, temp):
    # Pure-JAX reference of the PyTorch forward (computed in f32).
    a = out1.astype(jnp.float32) / temp
    b = out2.astype(jnp.float32) / temp
    log_p1 = jax.nn.log_softmax(a, axis=1)
    p2 = jax.nn.softmax(b, axis=1)
    return p2 * (jnp.log(p2) - log_p1)


if __name__ == "__main__":
    key = jax.random.PRNGKey(0)
    TEMP = 2.0  # deterministic "parameter" from __init__(temp)

    # (batch, num_classes) logits. Cases cover: tiny ragged batch + non-lane
    # class count, an aligned shape that splits across two grid steps, and a
    # bf16 case (compute stays f32; looser tolerance for the bf16 output cast).
    cases = [
        ((6, 10), jnp.float32, 1e-5),
        ((16, 384), jnp.float32, 1e-5),
        ((32, 200), jnp.bfloat16, 1e-2),
    ]
    for shape, dtype, atol in cases:
        k1, k2, key = jax.random.split(key, 3)
        out1 = jax.random.normal(k1, shape, dtype=jnp.float32).astype(dtype)
        out2 = jax.random.normal(k2, shape, dtype=jnp.float32).astype(dtype)

        loss = distillation_loss(out1, out2, TEMP)
        loss = jax.block_until_ready(loss)

        ref = _reference(out1, out2, TEMP)
        assert loss.shape == shape and loss.dtype == dtype
        assert jnp.allclose(loss.astype(jnp.float32), ref, atol=atol, rtol=1e-2)

    print("KERNEL_OK")
</pallas_src>

<mosaic_0001>
module attributes {stable_mosaic.version = 11 : i64} {
  func.func @_kl_div_kernel(%arg0: i32, %arg1: memref<6x10xf32, #tpu.memory_space<vmem>>, %arg2: memref<6x10xf32, #tpu.memory_space<vmem>>, %arg3: memref<6x10xf32, #tpu.memory_space<vmem>>) attributes {dimension_semantics = [#tpu.dimension_semantics<parallel>], iteration_bounds = array<i64: 1>, scalar_prefetch = 0 : i64, scratch_operands = 0 : i64, tpu.core_type = #tpu.core_type<tc>, window_params = [{transform_indices = @transform_0, window_bounds = array<i64: 6, 10>}, {transform_indices = @transform_1, window_bounds = array<i64: 6, 10>}, {transform_indices = @transform_2, window_bounds = array<i64: 6, 10>}]} {
    %c0 = arith.constant 0 : index
    %c0_0 = arith.constant 0 : index
    %0 = vector.load %arg1[%c0, %c0_0] : memref<6x10xf32, #tpu.memory_space<vmem>>, vector<6x10xf32>
    %cst = arith.constant 5.000000e-01 : f32
    %1 = vector.broadcast %cst : f32 to vector<6x10xf32>
    %2 = arith.mulf %0, %1 : vector<6x10xf32>
    %c0_1 = arith.constant 0 : index
    %c0_2 = arith.constant 0 : index
    %3 = vector.load %arg2[%c0_1, %c0_2] : memref<6x10xf32, #tpu.memory_space<vmem>>, vector<6x10xf32>
    %cst_3 = arith.constant 5.000000e-01 : f32
    %4 = vector.broadcast %cst_3 : f32 to vector<6x10xf32>
    %5 = arith.mulf %3, %4 : vector<6x10xf32>
    %cst_4 = arith.constant dense<0xFF800000> : vector<6xf32>
    %6 = vector.multi_reduction <maximumf>, %2, %cst_4 [1] : vector<6x10xf32> to vector<6xf32>
    %7 = vector.shape_cast %6 : vector<6xf32> to vector<6x1xf32>
    %cst_5 = arith.constant dense<0xFF800000> : vector<6xf32>
    %8 = vector.multi_reduction <maximumf>, %5, %cst_5 [1] : vector<6x10xf32> to vector<6xf32>
    %9 = vector.shape_cast %8 : vector<6xf32> to vector<6x1xf32>
    %10 = vector.broadcast %7 : vector<6x1xf32> to vector<6x10xf32>
    %11 = arith.subf %2, %10 : vector<6x10xf32>
    %12 = math.exp %11 : vector<6x10xf32>
    %cst_6 = arith.constant dense<0.000000e+00> : vector<6xf32>
    %13 = vector.multi_reduction <add>, %12, %cst_6 [1] : vector<6x10xf32> to vector<6xf32>
    %14 = vector.shape_cast %13 : vector<6xf32> to vector<6x1xf32>
    %15 = math.log %14 : vector<6x1xf32>
    %16 = vector.broadcast %9 : vector<6x1xf32> to vector<6x10xf32>
    %17 = arith.subf %5, %16 : vector<6x10xf32>
    %18 = math.exp %17 : vector<6x10xf32>
    %cst_7 = arith.constant dense<0.000000e+00> : vector<6xf32>
    %19 = vector.multi_reduction <add>, %18, %cst_7 [1] : vector<6x10xf32> to vector<6xf32>
    %20 = vector.shape_cast %19 : vector<6xf32> to vector<6x1xf32>
    %21 = math.log %20 : vector<6x1xf32>
    %22 = arith.subf %5, %2 : vector<6x10xf32>
    %23 = arith.subf %9, %7 : vector<6x1xf32>
    %24 = arith.subf %21, %15 : vector<6x1xf32>
    %25 = arith.addf %23, %24 : vector<6x1xf32>
    %26 = vector.broadcast %25 : vector<6x1xf32> to vector<6x10xf32>
    %27 = arith.subf %22, %26 : vector<6x10xf32>
    %28 = vector.broadcast %21 : vector<6x1xf32> to vector<6x10xf32>
    %29 = arith.subf %17, %28 : vector<6x10xf32>
    %30 = math.exp %29 : vector<6x10xf32>
    %31 = arith.mulf %30, %27 : vector<6x10xf32>
    %c0_8 = arith.constant 0 : index
    %c0_9 = arith.constant 0 : index
    %32 = vector.load %arg3[%c0_8, %c0_9] : memref<6x10xf32, #tpu.memory_space<vmem>>, vector<6x10xf32>
    tpu.vector_store %arg3[%c0_8, %c0_9], %31 {strides = array<i32>} : memref<6x10xf32, #tpu.memory_space<vmem>>, vector<6x10xf32>,
    return
  }
  func.func @transform_0(%arg0: i32) -> (i32, i32) {
    %c0_i32 = arith.constant 0 : i32
    %c0_i32_0 = arith.constant 0 : i32
    return %arg0, %c0_i32 : i32, i32
  }
  func.func @transform_1(%arg0: i32) -> (i32, i32) {
    %c0_i32 = arith.constant 0 : i32
    %c0_i32_0 = arith.constant 0 : i32
    return %arg0, %c0_i32 : i32, i32
  }
  func.func @transform_2(%arg0: i32) -> (i32, i32) {
    %c0_i32 = arith.constant 0 : i32
    %c0_i32_0 = arith.constant 0 : i32
    return %arg0, %c0_i32 : i32, i32
  }
}

</mosaic_0001>

<llo_original>
// kernel: tpu_custom_call.1
$region0: #{tpu_custom_call.1}
  #allocation0 [shape = 'u32[]', space=smem, size = 0x4, offset = 0x4, fixed_abs, tag = 'smem constant byte address 0x4 - core index']
  #allocation1 [shape = 'u32[144,128]{1,0:T(1,128)}', space=vmem, size = 0x12000, scoped, tag = 'internal scratch']
  %s0 = inlined_call_operand.hbm [shape: f32[6,10], index: 0, kind: input, shape index: {}]
  %s1 = inlined_call_operand.hbm [shape: f32[6,10], index: 1, kind: input, shape index: {}]
  %s2 = inlined_call_operand.hbm [shape: f32[6,10], index: 2, kind: output, shape index: {}]
  %s3 = sld [smem:[#allocation0]]
  $region26: #{tpu_custom_call.1} parent=0
    _
  %s5 = ssub.s32 1, %s3
  %s6 = scalar_select 0, %s5, %s3
  $region1: #{tpu_custom_call.1} parent=0
    #allocation2 [shape = 'u8[4096]{0}', space=vmem, size = 0x1000, scoped, tag = 'input window, operand 0, single buffered']
    #allocation3 [shape = 's32[1]{0}', space=sflag, size = 0x4, scoped, tag = 'scoped memory for tpu_custom_call.1']
    #allocation4 [shape = 's32[1]{0}', space=sflag, size = 0x4, scoped, tag = 'scoped memory for tpu_custom_call.1']
    #allocation5 [shape = 'u8[4096]{0}', space=vmem, size = 0x1000, scoped, tag = 'input window, operand 1, single buffered']
    #allocation6 [shape = 's32[1]{0}', space=sflag, size = 0x4, scoped, tag = 'scoped memory for tpu_custom_call.1']
    #allocation7 [shape = 'u8[4096]{0}', space=vmem, size = 0x1000, scoped, tag = 'output window, operand 0, single buffered']
    %7 = vsyncpa [#allocation3], 0
    %8 = vsyncpa [#allocation6], 0
    %9 = vsyncpa [#allocation4], 0
    // Predicated region
    $region2: #{tpu_custom_call.1} parent=1 // pred_check
      _
    $region3: #{tpu_custom_call.1} parent=1 // pred_check_branch
      %11 = sbr.rel (0) target = $region5
    $region4: #{tpu_custom_call.1} parent=1 // pred_region
      %s13 = ssub.s32 128, 128
      %14 = vsyncadd [#allocation3], %s13
      %s16 = sshll.u32 [#allocation2], 4
      %s17 = int_to_ptr.vmem [resolvable:$true] %s16
      %19 = dma.hbm_to_vmem [thread:$0]  %s0, 128, %s17, [#allocation3]
    $region5: #{tpu_custom_call.1} parent=1 // pred_fallthru
      _
    // Predicated region
    $region6: #{tpu_custom_call.1} parent=1 // pred_check
      _
    $region7: #{tpu_custom_call.1} parent=1 // pred_check_branch
      %21 = sbr.rel (0) target = $region9
    $region8: #{tpu_custom_call.1} parent=1 // pred_region
      %s23 = ssub.s32 128, 128
      %24 = vsyncadd [#allocation6], %s23
      %s26 = sshll.u32 [#allocation5], 4
      %s27 = int_to_ptr.vmem [resolvable:$true] %s26
      %29 = dma.hbm_to_vmem [thread:$0]  %s1, 128, %s27, [#allocation6]
    $region9: #{tpu_custom_call.1} parent=1 // pred_fallthru
      _
    // Predicated region
    $region10: #{tpu_custom_call.1} parent=1 // pred_check
      _
    $region11: #{tpu_custom_call.1} parent=1 // pred_check_branch
      %31 = sbr.rel (0) target = $region13
    $region12: #{tpu_custom_call.1} parent=1 // pred_region
      %32 = dma.done [#allocation3], 128
    $region13: #{tpu_custom_call.1} parent=1 // pred_fallthru
      _
    // Predicated region
    $region14: #{tpu_custom_call.1} parent=1 // pred_check
      _
    $region15: #{tpu_custom_call.1} parent=1 // pred_check_branch
      %34 = sbr.rel (0) target = $region17
    $region16: #{tpu_custom_call.1} parent=1 // pred_region
      %35 = dma.done [#allocation6], 128
    $region17: #{tpu_custom_call.1} parent=1 // pred_fallthru
      _
    %v36 = vld [vmem:[#allocation2] sm:$0x3f]
    %v37 = vmul.f32 %v36, 0.5
    %v38 = vld [vmem:[#allocation5] sm:$0x3f]
    %v39 = vmul.f32 %v38, 0.5
    %vm40 = vcmask 78848
    %v41 = vsel %vm40, %v37, -inf
    %42 = vmax.xlane.f32.xlu0 %v41
    %v43 = vpop.xlane.xlu0 %42
    %v44 = vsel %vm40, %v39, -inf
    %45 = vmax.xlane.f32.xlu0 %v44
    %v46 = vpop.xlane.xlu0 %45
    %v47 = vsub.f32 %v37, %v43
    %v48 = vmul.f32 %v47, 1.442695
    %v49 = vpow.pop %v48
    %v50 = vsel %vm40, %v49, 0.0
    %51 = vadd.xlane.f32.xlu0 %v50
    %v52 = vpop.xlane.xlu0 %51
    %v53 = vlog2.pop %v52
    %v54 = vmul.f32 %v53, 0.6931472
    %v55 = vsub.f32 %v39, %v46
    %v56 = vmul.f32 %v55, 1.442695
    %v57 = vpow.pop %v56
    %v58 = vsel %vm40, %v57, 0.0
    %59 = vadd.xlane.f32.xlu0 %v58
    %v60 = vpop.xlane.xlu0 %59
    %v61 = vlog2.pop %v60
    %v62 = vmul.f32 %v61, 0.6931472
    %v63 = vsub.f32 %v39, %v37
    %v64 = vsub.f32 %v46, %v43
    %v65 = vsub.f32 %v62, %v54
    %v66 = vadd.f32 %v64, %v65
    %v67 = vsub.f32 %v63, %v66
    %v68 = vsub.f32 %v55, %v62
    %v69 = vmul.f32 %v68, 1.442695
    %v70 = vpow.pop %v69
    %v71 = vmul.f32 %v70, %v67
    %72 = vst.msk [vmem:[#allocation7] sm:$0x3f] %vm40, %v71
    // Predicated region
    $region18: #{tpu_custom_call.1} parent=1 // pred_check
      _
    $region19: #{tpu_custom_call.1} parent=1 // pred_check_branch
      %74 = sbr.rel (0) target = $region21
    $region20: #{tpu_custom_call.1} parent=1 // pred_region
      %s76 = ssub.s32 128, 128
      %77 = vsyncadd [#allocation4], %s76
      %s79 = sshll.u32 [#allocation7], 4
      %s80 = int_to_ptr.vmem [resolvable:$true] %s79
      %82 = dma.vmem_to_hbm [thread:$0]  %s80, 128, %s2, [#allocation4]
    $region21: #{tpu_custom_call.1} parent=1 // pred_fallthru
      _
    // Predicated region
    $region22: #{tpu_custom_call.1} parent=1 // pred_check
      _
    $region23: #{tpu_custom_call.1} parent=1 // pred_check_branch
      %84 = sbr.rel (0) target = $region25
    $region24: #{tpu_custom_call.1} parent=1 // pred_region
      %85 = dma.done [#allocation4], 128
    $region25: #{tpu_custom_call.1} parent=1 // pred_fallthru
      _
    %86 = vsyncpa [#allocation3], 1
    %87 = vsyncpa [#allocation6], 1
    %88 = vsyncpa [#allocation4], 1

</llo_original>
